<compile_context>
chip_gen: v6e
topology: v6e:2x2x1
jax: 0.10.0
libtpu: 0.0.40
codegen_flags: <defaults>
</compile_context>

<pallas_src>
import functools

import jax
import jax.numpy as jnp
from jax import lax
from jax.experimental import pallas as pl
from jax.experimental.pallas import tpu as pltpu


def _pick_row_tile(n):
    """Largest convenient anchor-row tile that divides n (single tile for small n)."""
    if n <= 128:
        return n
    for t in (256, 128, 64, 32, 16, 8):
        if n % t == 0:
            return t
    return n


def _part_soft_triplet_kernel(lab_row_ref, lab_col_ref, e_ref, out_ref,
                              *, margin, final_scale):
    n_total, num_k, c_dim = e_ref.shape      # full (N, K, C) block, resident once
    tm = lab_col_ref.shape[0]                # anchor-row tile size
    max_value = float(jnp.finfo(jnp.float32).max)

    row0 = pl.program_id(0) * tm
    if tm % 8 == 0:
        row0 = pl.multiple_of(row0, 8)

    e_all = e_ref[...]                       # (N, K, C), input dtype (f32 or bf16)
    e_rows = e_ref[pl.ds(row0, tm), :, :]    # (tm, K, C) anchor rows of this tile

    ones_1c = jnp.ones((1, c_dim), jnp.float32)
    dist_acc = jnp.zeros((tm, n_total), jnp.float32)

    # ---- per-part distance accumulation (never materializes a (P, N, N) intermediate).
    # Part 0 (head) is skipped: its contribution (`distances_all`) is dead code upstream.
    for p in range(1, num_k):
        a = e_rows[:, p, :]                  # (tm, C)
        b = e_all[:, p, :]                   # (N, C)
        # MXU contraction over channels, f32 accumulation; operands keep their dtype.
        dp = lax.dot_general(a, b, (((1,), (1,)), ((), ())),
                             preferred_element_type=jnp.float32)          # (tm, N)
        a32 = a.astype(jnp.float32)
        b32 = b.astype(jnp.float32)
        a2 = jnp.sum(a32 * a32, axis=1, keepdims=True)                    # (tm, 1)
        # Column norms produced directly in (1, N) orientation (no transpose needed).
        b2 = lax.dot_general(ones_1c, b32 * b32, (((1,), (1,)), ((), ())))  # (1, N)
        dist2 = jnp.maximum(a2 - 2.0 * dp + b2, 0.0)
        # Forward-exact: sqrt(relu(d2)). The reference's epsilon / zero-mask only guards
        # the sqrt gradient at 0; the forward value is identical.
        dist_acc = dist_acc + jnp.sqrt(dist2)

    # mean over parts * (5/5 + enhence_head), folded into a single scale.
    pd = dist_acc * final_scale                                            # (tm, N)

    # ---- batch-hard triplet mining on this row tile (full column extent is resident).
    lab_row = lab_row_ref[...]               # (1, N) int32
    lab_col = lab_col_ref[...]               # (tm, 1) int32, labels of the anchor rows
    labels_eq = lab_col == lab_row           # (tm, N)

    gi = row0 + lax.broadcasted_iota(jnp.int32, (tm, n_total), 0)
    gj = lax.broadcasted_iota(jnp.int32, (tm, n_total), 1)
    not_self = gi != gj

    pos_f = jnp.logical_and(not_self, labels_eq).astype(jnp.float32)
    neg_f = jnp.logical_not(labels_eq).astype(jnp.float32)

    hardest_pos = jnp.max(pd * pos_f - (1.0 - pos_f), axis=-1, keepdims=True)           # (tm, 1)
    hardest_neg = jnp.min(pd * neg_f + (1.0 - neg_f) * max_value, axis=-1, keepdims=True)

    valid = jnp.logical_and(hardest_pos != -1.0,
                            hardest_neg != max_value).astype(jnp.float32)               # (tm, 1)
    losses = jnp.maximum(hardest_pos - hardest_neg + margin, 0.0)

    loss_sum = jnp.sum(losses * valid, axis=0, keepdims=True)                           # (1, 1)
    trivial_sum = jnp.sum((losses == 0.0).astype(jnp.float32) * valid,
                          axis=0, keepdims=True)                                        # (1, 1)
    n_valid = jnp.sum(valid, axis=0, keepdims=True)                                     # (1, 1)

    # Pack the three per-tile partial sums into one lane-indexed (1, 3) slab.
    lane = lax.broadcasted_iota(jnp.int32, (1, 3), 1)
    packed = jnp.where(lane == 0, loss_sum,
                       jnp.where(lane == 1, trivial_sum, n_valid))                      # (1, 3)
    out_ref[...] = packed.reshape(1, 1, 3)


@functools.partial(jax.jit,
                   static_argnames=("margin", "epsilon", "enhence_head", "row_tile"))
def part_soft_triplet_loss(part_based_embeddings, labels, margin=0.3, epsilon=1e-16,
                           enhence_head=0.5, row_tile=None):
    """part_based_embeddings: (N, K, C) f32/bf16; labels: (N,) int.

    epsilon only affects the sqrt gradient at zero in the reference; the forward value is
    identical without it, so it is unused here (kept for interface parity).
    """
    del epsilon
    n, k, c = part_based_embeddings.shape
    num_parts = k - 1
    final_scale = (5 / 5 + enhence_head) / num_parts   # mean over body parts * 1.5

    tm = row_tile if row_tile is not None else _pick_row_tile(n)
    assert n % tm == 0, "row_tile must divide the batch size"
    num_tiles = n // tm

    lab_row = labels.reshape(1, n).astype(jnp.int32)
    lab_col = labels.reshape(n, 1).astype(jnp.int32)

    grid_spec = pltpu.PrefetchScalarGridSpec(
        num_scalar_prefetch=0,
        grid=(num_tiles,),
        in_specs=[
            pl.BlockSpec((1, n), lambda i: (0, 0)),        # labels (row orientation), full
            pl.BlockSpec((tm, 1), lambda i: (i, 0)),       # labels of this anchor-row tile
            pl.BlockSpec((n, k, c), lambda i: (0, 0, 0)),  # embeddings, resident once
        ],
        out_specs=pl.BlockSpec((1, 1, 3), lambda i: (i, 0, 0)),
    )

    partials = pl.pallas_call(
        functools.partial(_part_soft_triplet_kernel,
                          margin=margin, final_scale=final_scale),
        out_shape=jax.ShapeDtypeStruct((num_tiles, 1, 3), jnp.float32),
        grid_spec=grid_spec,
        compiler_params=pltpu.CompilerParams(
            dimension_semantics=("parallel",),               # megacore row-tile sharding
            vmem_limit_bytes=48 * 1024 * 1024,               # safe on v7x (64 MiB physical)
        ),
    )(lab_row, lab_col, part_based_embeddings)

    # Tiny epilogue: cross-tile (cross-core) reduction + guarded divides.
    sums = jnp.sum(partials.reshape(num_tiles, 3), axis=0)
    loss_sum, trivial_sum, n_valid = sums[0], sums[1], sums[2]
    # TODO(synk): reference returns None (with a warning) when no valid triplets exist;
    # here the division is guarded and loss/trivial come back as 0.0 in that case.
    has_valid = n_valid > 0.0
    safe = jnp.maximum(n_valid, 1.0)
    loss = jnp.where(has_valid, loss_sum / safe, 0.0)
    trivial = jnp.where(has_valid, trivial_sum / safe, 0.0)
    valid_ratio = n_valid / n
    return loss, trivial, valid_ratio


def reference(part_based_embeddings, labels, margin=0.3, epsilon=1e-16, enhence_head=0.5):
    """Pure-JAX reference mirroring the PyTorch module (parts_visibility=None path)."""
    emb = jnp.transpose(part_based_embeddings, (1, 0, 2)).astype(jnp.float32)[1:]  # (K-1,N,C)
    dp = jnp.einsum('knc,kmc->knm', emb, emb)
    ss = jnp.diagonal(dp, axis1=1, axis2=2)
    dist = jax.nn.relu(ss[:, :, None] - 2.0 * dp + ss[:, None, :])
    zmask = (dist == 0.0).astype(jnp.float32)
    dist = jnp.sqrt(dist + zmask * epsilon) * (1.0 - zmask)
    pd = dist.mean(0) * (5 / 5 + enhence_head)

    max_value = jnp.finfo(jnp.float32).max
    valid_pd = pd != -1.0
    labels_eq = labels[:, None] == labels[None, :]
    not_eye = ~jnp.eye(labels.shape[0], dtype=bool)
    pos_mask = (not_eye & labels_eq & valid_pd).astype(jnp.float32)
    neg_mask = ((~labels_eq) & valid_pd).astype(jnp.float32)
    hp = jnp.max(pd * pos_mask - (1.0 - pos_mask), axis=-1)
    hn = jnp.min(pd * neg_mask + (1.0 - neg_mask) * max_value, axis=-1)
    valid_tr = ((hp != -1.0) & (hn != max_value)).astype(jnp.float32)
    losses = jax.nn.relu(hp - hn + margin)
    n_valid = jnp.sum(valid_tr)
    loss = jnp.sum(losses * valid_tr) / n_valid
    trivial = jnp.sum((losses == 0.0).astype(jnp.float32) * valid_tr) / n_valid
    valid_ratio = n_valid / labels.shape[0]
    return loss, trivial, valid_ratio


if __name__ == "__main__":
    import numpy as np

    # ---- test 1: small batch, single row tile (grid = 1)
    N, K, C = 8, 5, 32  # batch, parts (head + 4 body parts), embedding dim
    key = jax.random.PRNGKey(0)
    k1, k2 = jax.random.split(key)
    emb = jax.random.normal(k1, (N, K, C), dtype=jnp.float32)
    labels = jnp.array([0, 0, 1, 1, 2, 2, 3, 3], dtype=jnp.int32)

    loss, trivial, valid = part_soft_triplet_loss(emb, labels)
    jax.block_until_ready((loss, trivial, valid))

    ref_loss, ref_trivial, ref_valid = reference(emb, labels)
    assert np.allclose(np.asarray(loss), np.asarray(ref_loss), rtol=1e-4, atol=1e-4)
    assert np.allclose(np.asarray(trivial), np.asarray(ref_trivial), rtol=1e-4, atol=1e-4)
    assert np.allclose(np.asarray(valid), np.asarray(ref_valid), rtol=1e-4, atol=1e-4)

    # ---- test 2: exercise the multi-tile "parallel" grid path (4 tiles of 8 anchor rows)
    N2 = 32
    emb2 = jax.random.normal(k2, (N2, K, C), dtype=jnp.float32)
    labels2 = (jnp.arange(N2, dtype=jnp.int32) // 4).astype(jnp.int32)

    loss2, trivial2, valid2 = part_soft_triplet_loss(emb2, labels2, row_tile=8)
    jax.block_until_ready((loss2, trivial2, valid2))

    ref_loss2, ref_trivial2, ref_valid2 = reference(emb2, labels2)
    assert np.allclose(np.asarray(loss2), np.asarray(ref_loss2), rtol=1e-4, atol=1e-4)
    assert np.allclose(np.asarray(trivial2), np.asarray(ref_trivial2), rtol=1e-4, atol=1e-4)
    assert np.allclose(np.asarray(valid2), np.asarray(ref_valid2), rtol=1e-4, atol=1e-4)

    print("KERNEL_OK")
</pallas_src>

<mosaic_0001>
module attributes {stable_mosaic.version = 11 : i64} {
  func.func @_part_soft_triplet_kernel(%arg0: i32, %arg1: memref<1x8xi32, #tpu.memory_space<vmem>>, %arg2: memref<8x1xi32, #tpu.memory_space<vmem>>, %arg3: memref<8x5x32xf32, #tpu.memory_space<vmem>>, %arg4: memref<1x1x3xf32, #tpu.memory_space<vmem>>) attributes {dimension_semantics = [#tpu.dimension_semantics<parallel>], iteration_bounds = array<i64: 1>, scalar_prefetch = 0 : i64, scratch_operands = 0 : i64, tpu.core_type = #tpu.core_type<tc>, window_params = [{pipeline_mode = #tpu.pipeline_mode<synchronous>, transform_indices = @transform_0, window_bounds = array<i64: 1, 8>}, {transform_indices = @transform_1, window_bounds = array<i64: 8, 1>}, {pipeline_mode = #tpu.pipeline_mode<synchronous>, transform_indices = @transform_2, window_bounds = array<i64: 8, 5, 32>}, {transform_indices = @transform_3, window_bounds = array<i64: 1, 1, 3>}]} {
    %c8_i32 = arith.constant 8 : i32
    %0 = arith.muli %arg0, %c8_i32 : i32
    %1 = tpu.assume_multiple %0, 8 : i32
    %c0 = arith.constant 0 : index
    %c0_0 = arith.constant 0 : index
    %c0_1 = arith.constant 0 : index
    %2 = vector.load %arg3[%c0, %c0_0, %c0_1] : memref<8x5x32xf32, #tpu.memory_space<vmem>>, vector<8x5x32xf32>
    %3 = arith.index_cast %1 : i32 to index
    %c0_2 = arith.constant 0 : index
    %c0_3 = arith.constant 0 : index
    %4 = vector.load %arg3[%3, %c0_2, %c0_3] : memref<8x5x32xf32, #tpu.memory_space<vmem>>, vector<8x5x32xf32>
    %cst = arith.constant 1.000000e+00 : f32
    %5 = vector.broadcast %cst : f32 to vector<1x32xf32>
    %cst_4 = arith.constant 0.000000e+00 : f32
    %6 = vector.broadcast %cst_4 : f32 to vector<8x8xf32>
    %7 = vector.extract_strided_slice %4 {offsets = [0, 1, 0], sizes = [8, 1, 32], strides = [1, 1, 1]} : vector<8x5x32xf32> to vector<8x1x32xf32>
    %8 = vector.shape_cast %7 : vector<8x1x32xf32> to vector<8x32xf32>
    %9 = vector.extract_strided_slice %2 {offsets = [0, 1, 0], sizes = [8, 1, 32], strides = [1, 1, 1]} : vector<8x5x32xf32> to vector<8x1x32xf32>
    %10 = vector.shape_cast %9 : vector<8x1x32xf32> to vector<8x32xf32>
    %cst_5 = arith.constant dense<0.000000e+00> : vector<8x8xf32>
    %11 = tpu.matmul %8, %10, %cst_5 {dimension_numbers = #tpu.dot_dimension_numbers<[1], [1], [0], [0], [0, 0, 1, 0], [], []>} : vector<8x32xf32>, vector<8x32xf32>, vector<8x8xf32> -> vector<8x8xf32>
    %12 = arith.mulf %8, %8 : vector<8x32xf32>
    %cst_6 = arith.constant dense<0.000000e+00> : vector<8xf32>
    %13 = vector.multi_reduction <add>, %12, %cst_6 [1] : vector<8x32xf32> to vector<8xf32>
    %14 = vector.shape_cast %13 : vector<8xf32> to vector<8x1xf32>
    %15 = arith.mulf %10, %10 : vector<8x32xf32>
    %cst_7 = arith.constant dense<0.000000e+00> : vector<1x8xf32>
    %16 = tpu.matmul %5, %15, %cst_7 {dimension_numbers = #tpu.dot_dimension_numbers<[1], [1], [0], [0], [0, 0, 1, 0], [], []>} : vector<1x32xf32>, vector<8x32xf32>, vector<1x8xf32> -> vector<1x8xf32>
    %cst_8 = arith.constant 2.000000e+00 : f32
    %17 = vector.broadcast %cst_8 : f32 to vector<8x8xf32>
    %18 = arith.mulf %17, %11 : vector<8x8xf32>
    %19 = vector.broadcast %14 : vector<8x1xf32> to vector<8x8xf32>
    %20 = arith.subf %19, %18 : vector<8x8xf32>
    %21 = vector.broadcast %16 : vector<1x8xf32> to vector<8x8xf32>
    %22 = arith.addf %20, %21 : vector<8x8xf32>
    %cst_9 = arith.constant 0.000000e+00 : f32
    %23 = vector.broadcast %cst_9 : f32 to vector<8x8xf32>
    %24 = arith.maximumf %22, %23 : vector<8x8xf32>
    %25 = math.sqrt %24 : vector<8x8xf32>
    %26 = arith.addf %6, %25 : vector<8x8xf32>
    %27 = vector.extract_strided_slice %4 {offsets = [0, 2, 0], sizes = [8, 1, 32], strides = [1, 1, 1]} : vector<8x5x32xf32> to vector<8x1x32xf32>
    %28 = vector.shape_cast %27 : vector<8x1x32xf32> to vector<8x32xf32>
    %29 = vector.extract_strided_slice %2 {offsets = [0, 2, 0], sizes = [8, 1, 32], strides = [1, 1, 1]} : vector<8x5x32xf32> to vector<8x1x32xf32>
    %30 = vector.shape_cast %29 : vector<8x1x32xf32> to vector<8x32xf32>
    %cst_10 = arith.constant dense<0.000000e+00> : vector<8x8xf32>
    %31 = tpu.matmul %28, %30, %cst_10 {dimension_numbers = #tpu.dot_dimension_numbers<[1], [1], [0], [0], [0, 0, 1, 0], [], []>} : vector<8x32xf32>, vector<8x32xf32>, vector<8x8xf32> -> vector<8x8xf32>
    %32 = arith.mulf %28, %28 : vector<8x32xf32>
    %cst_11 = arith.constant dense<0.000000e+00> : vector<8xf32>
    %33 = vector.multi_reduction <add>, %32, %cst_11 [1] : vector<8x32xf32> to vector<8xf32>
    %34 = vector.shape_cast %33 : vector<8xf32> to vector<8x1xf32>
    %35 = arith.mulf %30, %30 : vector<8x32xf32>
    %cst_12 = arith.constant dense<0.000000e+00> : vector<1x8xf32>
    %36 = tpu.matmul %5, %35, %cst_12 {dimension_numbers = #tpu.dot_dimension_numbers<[1], [1], [0], [0], [0, 0, 1, 0], [], []>} : vector<1x32xf32>, vector<8x32xf32>, vector<1x8xf32> -> vector<1x8xf32>
    %cst_13 = arith.constant 2.000000e+00 : f32
    %37 = vector.broadcast %cst_13 : f32 to vector<8x8xf32>
    %38 = arith.mulf %37, %31 : vector<8x8xf32>
    %39 = vector.broadcast %34 : vector<8x1xf32> to vector<8x8xf32>
    %40 = arith.subf %39, %38 : vector<8x8xf32>
    %41 = vector.broadcast %36 : vector<1x8xf32> to vector<8x8xf32>
    %42 = arith.addf %40, %41 : vector<8x8xf32>
    %cst_14 = arith.constant 0.000000e+00 : f32
    %43 = vector.broadcast %cst_14 : f32 to vector<8x8xf32>
    %44 = arith.maximumf %42, %43 : vector<8x8xf32>
    %45 = math.sqrt %44 : vector<8x8xf32>
    %46 = arith.addf %26, %45 : vector<8x8xf32>
    %47 = vector.extract_strided_slice %4 {offsets = [0, 3, 0], sizes = [8, 1, 32], strides = [1, 1, 1]} : vector<8x5x32xf32> to vector<8x1x32xf32>
    %48 = vector.shape_cast %47 : vector<8x1x32xf32> to vector<8x32xf32>
    %49 = vector.extract_strided_slice %2 {offsets = [0, 3, 0], sizes = [8, 1, 32], strides = [1, 1, 1]} : vector<8x5x32xf32> to vector<8x1x32xf32>
    %50 = vector.shape_cast %49 : vector<8x1x32xf32> to vector<8x32xf32>
    %cst_15 = arith.constant dense<0.000000e+00> : vector<8x8xf32>
    %51 = tpu.matmul %48, %50, %cst_15 {dimension_numbers = #tpu.dot_dimension_numbers<[1], [1], [0], [0], [0, 0, 1, 0], [], []>} : vector<8x32xf32>, vector<8x32xf32>, vector<8x8xf32> -> vector<8x8xf32>
    %52 = arith.mulf %48, %48 : vector<8x32xf32>
    %cst_16 = arith.constant dense<0.000000e+00> : vector<8xf32>
    %53 = vector.multi_reduction <add>, %52, %cst_16 [1] : vector<8x32xf32> to vector<8xf32>
    %54 = vector.shape_cast %53 : vector<8xf32> to vector<8x1xf32>
    %55 = arith.mulf %50, %50 : vector<8x32xf32>
    %cst_17 = arith.constant dense<0.000000e+00> : vector<1x8xf32>
    %56 = tpu.matmul %5, %55, %cst_17 {dimension_numbers = #tpu.dot_dimension_numbers<[1], [1], [0], [0], [0, 0, 1, 0], [], []>} : vector<1x32xf32>, vector<8x32xf32>, vector<1x8xf32> -> vector<1x8xf32>
    %cst_18 = arith.constant 2.000000e+00 : f32
    %57 = vector.broadcast %cst_18 : f32 to vector<8x8xf32>
    %58 = arith.mulf %57, %51 : vector<8x8xf32>
    %59 = vector.broadcast %54 : vector<8x1xf32> to vector<8x8xf32>
    %60 = arith.subf %59, %58 : vector<8x8xf32>
    %61 = vector.broadcast %56 : vector<1x8xf32> to vector<8x8xf32>
    %62 = arith.addf %60, %61 : vector<8x8xf32>
    %cst_19 = arith.constant 0.000000e+00 : f32
    %63 = vector.broadcast %cst_19 : f32 to vector<8x8xf32>
    %64 = arith.maximumf %62, %63 : vector<8x8xf32>
    %65 = math.sqrt %64 : vector<8x8xf32>
    %66 = arith.addf %46, %65 : vector<8x8xf32>
    %67 = vector.extract_strided_slice %4 {offsets = [0, 4, 0], sizes = [8, 1, 32], strides = [1, 1, 1]} : vector<8x5x32xf32> to vector<8x1x32xf32>
    %68 = vector.shape_cast %67 : vector<8x1x32xf32> to vector<8x32xf32>
    %69 = vector.extract_strided_slice %2 {offsets = [0, 4, 0], sizes = [8, 1, 32], strides = [1, 1, 1]} : vector<8x5x32xf32> to vector<8x1x32xf32>
    %70 = vector.shape_cast %69 : vector<8x1x32xf32> to vector<8x32xf32>
    %cst_20 = arith.constant dense<0.000000e+00> : vector<8x8xf32>
    %71 = tpu.matmul %68, %70, %cst_20 {dimension_numbers = #tpu.dot_dimension_numbers<[1], [1], [0], [0], [0, 0, 1, 0], [], []>} : vector<8x32xf32>, vector<8x32xf32>, vector<8x8xf32> -> vector<8x8xf32>
    %72 = arith.mulf %68, %68 : vector<8x32xf32>
    %cst_21 = arith.constant dense<0.000000e+00> : vector<8xf32>
    %73 = vector.multi_reduction <add>, %72, %cst_21 [1] : vector<8x32xf32> to vector<8xf32>
    %74 = vector.shape_cast %73 : vector<8xf32> to vector<8x1xf32>
    %75 = arith.mulf %70, %70 : vector<8x32xf32>
    %cst_22 = arith.constant dense<0.000000e+00> : vector<1x8xf32>
    %76 = tpu.matmul %5, %75, %cst_22 {dimension_numbers = #tpu.dot_dimension_numbers<[1], [1], [0], [0], [0, 0, 1, 0], [], []>} : vector<1x32xf32>, vector<8x32xf32>, vector<1x8xf32> -> vector<1x8xf32>
    %cst_23 = arith.constant 2.000000e+00 : f32
    %77 = vector.broadcast %cst_23 : f32 to vector<8x8xf32>
    %78 = arith.mulf %77, %71 : vector<8x8xf32>
    %79 = vector.broadcast %74 : vector<8x1xf32> to vector<8x8xf32>
    %80 = arith.subf %79, %78 : vector<8x8xf32>
    %81 = vector.broadcast %76 : vector<1x8xf32> to vector<8x8xf32>
    %82 = arith.addf %80, %81 : vector<8x8xf32>
    %cst_24 = arith.constant 0.000000e+00 : f32
    %83 = vector.broadcast %cst_24 : f32 to vector<8x8xf32>
    %84 = arith.maximumf %82, %83 : vector<8x8xf32>
    %85 = math.sqrt %84 : vector<8x8xf32>
    %86 = arith.addf %66, %85 : vector<8x8xf32>
    %cst_25 = arith.constant 3.750000e-01 : f32
    %87 = vector.broadcast %cst_25 : f32 to vector<8x8xf32>
    %88 = arith.mulf %86, %87 : vector<8x8xf32>
    %c0_26 = arith.constant 0 : index
    %c0_27 = arith.constant 0 : index
    %89 = vector.load %arg1[%c0_26, %c0_27] : memref<1x8xi32, #tpu.memory_space<vmem>>, vector<1x8xi32>
    %c0_28 = arith.constant 0 : index
    %c0_29 = arith.constant 0 : index
    %90 = vector.load %arg2[%c0_28, %c0_29] : memref<8x1xi32, #tpu.memory_space<vmem>>, vector<8x1xi32>
    %91 = vector.broadcast %90 : vector<8x1xi32> to vector<8x8xi32>
    %92 = vector.broadcast %89 : vector<1x8xi32> to vector<8x8xi32>
    %93 = arith.cmpi eq, %91, %92 : vector<8x8xi32>
    %94 = tpu.iota {dimensions = array<i32: 0>} : vector<8x8xi32>
    %95 = vector.broadcast %1 : i32 to vector<8x8xi32>
    %96 = arith.addi %95, %94 : vector<8x8xi32>
    %97 = tpu.iota {dimensions = array<i32: 1>} : vector<8x8xi32>
    %98 = arith.cmpi ne, %96, %97 : vector<8x8xi32>
    %99 = arith.andi %98, %93 : vector<8x8xi1>
    %100 = arith.extui %99 : vector<8x8xi1> to vector<8x8xi32>
    %101 = arith.sitofp %100 : vector<8x8xi32> to vector<8x8xf32>
    %cst_30 = arith.constant dense<true> : vector<8x8xi1>
    %102 = arith.xori %93, %cst_30 : vector<8x8xi1>
    %103 = arith.extui %102 : vector<8x8xi1> to vector<8x8xi32>
    %104 = arith.sitofp %103 : vector<8x8xi32> to vector<8x8xf32>
    %105 = arith.mulf %88, %101 : vector<8x8xf32>
    %cst_31 = arith.constant 1.000000e+00 : f32
    %106 = vector.broadcast %cst_31 : f32 to vector<8x8xf32>
    %107 = arith.subf %106, %101 : vector<8x8xf32>
    %108 = arith.subf %105, %107 : vector<8x8xf32>
    %cst_32 = arith.constant dense<0xFF800000> : vector<8xf32>
    %109 = vector.multi_reduction <maximumf>, %108, %cst_32 [1] : vector<8x8xf32> to vector<8xf32>
    %110 = vector.shape_cast %109 : vector<8xf32> to vector<8x1xf32>
    %111 = arith.mulf %88, %104 : vector<8x8xf32>
    %cst_33 = arith.constant 1.000000e+00 : f32
    %112 = vector.broadcast %cst_33 : f32 to vector<8x8xf32>
    %113 = arith.subf %112, %104 : vector<8x8xf32>
    %cst_34 = arith.constant 3.40282347E+38 : f32
    %114 = vector.broadcast %cst_34 : f32 to vector<8x8xf32>
    %115 = arith.mulf %113, %114 : vector<8x8xf32>
    %116 = arith.addf %111, %115 : vector<8x8xf32>
    %cst_35 = arith.constant dense<0x7F800000> : vector<8xf32>
    %117 = vector.multi_reduction <minimumf>, %116, %cst_35 [1] : vector<8x8xf32> to vector<8xf32>
    %118 = vector.shape_cast %117 : vector<8xf32> to vector<8x1xf32>
    %cst_36 = arith.constant -1.000000e+00 : f32
    %119 = vector.broadcast %cst_36 : f32 to vector<8x1xf32>
    %120 = arith.cmpf one, %110, %119 : vector<8x1xf32>
    %cst_37 = arith.constant 3.40282347E+38 : f32
    %121 = vector.broadcast %cst_37 : f32 to vector<8x1xf32>
    %122 = arith.cmpf one, %118, %121 : vector<8x1xf32>
    %123 = arith.andi %120, %122 : vector<8x1xi1>
    %124 = arith.extui %123 : vector<8x1xi1> to vector<8x1xi32>
    %125 = arith.sitofp %124 : vector<8x1xi32> to vector<8x1xf32>
    %126 = arith.subf %110, %118 : vector<8x1xf32>
    %cst_38 = arith.constant 3.000000e-01 : f32
    %127 = vector.broadcast %cst_38 : f32 to vector<8x1xf32>
    %128 = arith.addf %126, %127 : vector<8x1xf32>
    %cst_39 = arith.constant 0.000000e+00 : f32
    %129 = vector.broadcast %cst_39 : f32 to vector<8x1xf32>
    %130 = arith.maximumf %128, %129 : vector<8x1xf32>
    %131 = arith.mulf %130, %125 : vector<8x1xf32>
    %cst_40 = arith.constant dense<0.000000e+00> : vector<1xf32>
    %132 = vector.multi_reduction <add>, %131, %cst_40 [0] : vector<8x1xf32> to vector<1xf32>
    %133 = vector.shape_cast %132 : vector<1xf32> to vector<1x1xf32>
    %cst_41 = arith.constant 0.000000e+00 : f32
    %134 = vector.broadcast %cst_41 : f32 to vector<8x1xf32>
    %135 = arith.cmpf oeq, %130, %134 : vector<8x1xf32>
    %136 = arith.extui %135 : vector<8x1xi1> to vector<8x1xi32>
    %137 = arith.sitofp %136 : vector<8x1xi32> to vector<8x1xf32>
    %138 = arith.mulf %137, %125 : vector<8x1xf32>
    %cst_42 = arith.constant dense<0.000000e+00> : vector<1xf32>
    %139 = vector.multi_reduction <add>, %138, %cst_42 [0] : vector<8x1xf32> to vector<1xf32>
    %140 = vector.shape_cast %139 : vector<1xf32> to vector<1x1xf32>
    %cst_43 = arith.constant dense<0.000000e+00> : vector<1xf32>
    %141 = vector.multi_reduction <add>, %125, %cst_43 [0] : vector<8x1xf32> to vector<1xf32>
    %142 = vector.shape_cast %141 : vector<1xf32> to vector<1x1xf32>
    %143 = tpu.iota {dimensions = array<i32: 1>} : vector<1x3xi32>
    %c0_i32 = arith.constant 0 : i32
    %144 = vector.broadcast %c0_i32 : i32 to vector<1x3xi32>
    %145 = arith.cmpi eq, %143, %144 : vector<1x3xi32>
    %c1_i32 = arith.constant 1 : i32
    %146 = vector.broadcast %c1_i32 : i32 to vector<1x3xi32>
    %147 = arith.cmpi eq, %143, %146 : vector<1x3xi32>
    %148 = vector.shape_cast %140 : vector<1x1xf32> to vector<1x1xf32>
    %149 = vector.broadcast %148 : vector<1x1xf32> to vector<1x3xf32>
    %150 = vector.shape_cast %142 : vector<1x1xf32> to vector<1x1xf32>
    %151 = vector.broadcast %150 : vector<1x1xf32> to vector<1x3xf32>
    %152 = arith.select %147, %149, %151 : vector<1x3xi1>, vector<1x3xf32>
    %153 = vector.shape_cast %133 : vector<1x1xf32> to vector<1x1xf32>
    %154 = vector.broadcast %153 : vector<1x1xf32> to vector<1x3xf32>
    %155 = arith.select %145, %154, %152 : vector<1x3xi1>, vector<1x3xf32>
    %156 = vector.shape_cast %155 : vector<1x3xf32> to vector<1x1x3xf32>
    %c0_44 = arith.constant 0 : index
    %c0_45 = arith.constant 0 : index
    %c0_46 = arith.constant 0 : index
    %157 = vector.load %arg4[%c0_44, %c0_45, %c0_46] : memref<1x1x3xf32, #tpu.memory_space<vmem>>, vector<1x1x3xf32>
    tpu.vector_store %arg4[%c0_44, %c0_45, %c0_46], %156 {strides = array<i32>} : memref<1x1x3xf32, #tpu.memory_space<vmem>>, vector<1x1x3xf32>,
    return
  }
  func.func @transform_0(%arg0: i32) -> (i32, i32) {
    %c0_i32 = arith.constant 0 : i32
    %c0_i32_0 = arith.constant 0 : i32
    %c0_i32_1 = arith.constant 0 : i32
    return %c0_i32, %c0_i32_0 : i32, i32
  }
  func.func @transform_1(%arg0: i32) -> (i32, i32) {
    %c0_i32 = arith.constant 0 : i32
    %c0_i32_0 = arith.constant 0 : i32
    return %arg0, %c0_i32 : i32, i32
  }
  func.func @transform_2(%arg0: i32) -> (i32, i32, i32) {
    %c0_i32 = arith.constant 0 : i32
    %c0_i32_0 = arith.constant 0 : i32
    %c0_i32_1 = arith.constant 0 : i32
    %c0_i32_2 = arith.constant 0 : i32
    return %c0_i32, %c0_i32_0, %c0_i32_1 : i32, i32, i32
  }
  func.func @transform_3(%arg0: i32) -> (i32, i32, i32) {
    %c0_i32 = arith.constant 0 : i32
    %c0_i32_0 = arith.constant 0 : i32
    %c0_i32_1 = arith.constant 0 : i32
    return %arg0, %c0_i32, %c0_i32_0 : i32, i32, i32
  }
}

</mosaic_0001>

<llo_original>
// kernel: part_soft_triplet_loss.1
$region0: #{part_soft_triplet_loss.1}
  #allocation0 [shape = 'u32[]', space=smem, size = 0x4, offset = 0x4, fixed_abs, tag = 'smem constant byte address 0x4 - core index']
  #allocation1 [shape = 'u32[144,128]{1,0:T(1,128)}', space=vmem, size = 0x12000, scoped, tag = 'internal scratch']
  %s0 = inlined_call_operand.vmem [shape: s32[1,8], index: 0, kind: input, shape index: {}]
  %s1 = inlined_call_operand.vmem [shape: s32[8,1], index: 1, kind: input, shape index: {}]
  %s2 = inlined_call_operand.vmem [shape: f32[8,5,32], index: 2, kind: input, shape index: {}]
  %s3 = inlined_call_operand.vmem [shape: f32[1,1,3], index: 3, kind: output, shape index: {}]
  %s4 = sld [smem:[#allocation0]]
  $region22: #{part_soft_triplet_loss.1} parent=0
    _
  %s6 = ssub.s32 1, %s4
  %s7 = scalar_select 0, %s6, %s4
  // Predicated region
  $region2: #{part_soft_triplet_loss.1} parent=0 // pred_check
    _
  $region3: #{part_soft_triplet_loss.1} parent=0 // pred_check_branch
    %9 = sbr.rel (0) target = $region5
  $region4: #{part_soft_triplet_loss.1} parent=0 // pred_region
    _
  $region5: #{part_soft_triplet_loss.1} parent=0 // pred_fallthru
    _
  // Predicated region
  $region6: #{part_soft_triplet_loss.1} parent=0 // pred_check
    _
  $region7: #{part_soft_triplet_loss.1} parent=0 // pred_check_branch
    %11 = sbr.rel (0) target = $region9
  $region8: #{part_soft_triplet_loss.1} parent=0 // pred_region
    _
  $region9: #{part_soft_triplet_loss.1} parent=0 // pred_fallthru
    _
  // Predicated region
  $region10: #{part_soft_triplet_loss.1} parent=0 // pred_check
    _
  $region11: #{part_soft_triplet_loss.1} parent=0 // pred_check_branch
    %13 = sbr.rel (0) target = $region13
  $region12: #{part_soft_triplet_loss.1} parent=0 // pred_region
    _
  $region13: #{part_soft_triplet_loss.1} parent=0 // pred_fallthru
    _
  %s14 = smul.u32 0, 8
  %v15 = vld [vmem:[%s2] sm:$0x1f]
  %v16 = vld [vmem:[%s2 + $0x8] sm:$0x1f]
  %v17 = vld [vmem:[%s2 + $0x10] sm:$0x1f]
  %v18 = vld [vmem:[%s2 + $0x18] sm:$0x1f]
  %v19 = vld [vmem:[%s2 + $0x20] sm:$0x1f]
  %v20 = vld [vmem:[%s2 + $0x28] sm:$0x1f]
  %v21 = vld [vmem:[%s2 + $0x30] sm:$0x1f]
  %v22 = vld [vmem:[%s2 + $0x38] sm:$0x1f]
  %s23 = smul.u32 %s14, 8
  %s24 = scalar_lea.vmem %s2, %s23
  %v25 = vld [vmem:[%s24] sm:$0x1f]
  %v26 = vld [vmem:[%s24 + $0x8] sm:$0x1f]
  %v27 = vld [vmem:[%s24 + $0x10] sm:$0x1f]
  %v28 = vld [vmem:[%s24 + $0x18] sm:$0x1f]
  %v29 = vld [vmem:[%s24 + $0x20] sm:$0x1f]
  %v30 = vld [vmem:[%s24 + $0x28] sm:$0x1f]
  %v31 = vld [vmem:[%s24 + $0x30] sm:$0x1f]
  %v32 = vld [vmem:[%s24 + $0x38] sm:$0x1f]
  %v41 = vrot.slane %v25, 1
  %vm42 = vcmask 1041409
  %v43 = vsel %vm42, %v26, %v41
  %v44 = vrot.slane %v27, 7
  %vm45 = vcmask 1042434
  %v46 = vsel %vm45, %v44, %v43
  %v47 = vrot.slane %v28, 6
  %vm48 = vcmask 1043459
  %v49 = vsel %vm48, %v47, %v46
  %v50 = vrot.slane %v29, 5
  %vm51 = vcmask 1044484
  %v52 = vsel %vm51, %v50, %v49
  %v53 = vrot.slane %v30, 4
  %vm54 = vcmask 1045509
  %v55 = vsel %vm54, %v53, %v52
  %v56 = vrot.slane %v31, 3
  %vm57 = vcmask 1046534
  %v58 = vsel %vm57, %v56, %v55
  %v59 = vrot.slane %v32, 2
  %vm60 = vcmask 1047559
  %v61 = vsel %vm60, %v59, %v58
  %v70 = vrot.slane %v15, 1
  %v71 = vsel %vm42, %v16, %v70
  %v72 = vrot.slane %v17, 7
  %v73 = vsel %vm45, %v72, %v71
  %v74 = vrot.slane %v18, 6
  %v75 = vsel %vm48, %v74, %v73
  %v76 = vrot.slane %v19, 5
  %v77 = vsel %vm51, %v76, %v75
  %v78 = vrot.slane %v20, 4
  %v79 = vsel %vm54, %v78, %v77
  %v80 = vrot.slane %v21, 3
  %v81 = vsel %vm57, %v80, %v79
  %v82 = vrot.slane %v22, 2
  %v83 = vsel %vm60, %v82, %v81
  %vm84 = vcmask 261120
  %v85 = vsel %vm84, %v61, 0
  %v87 = vsel %vm84, %v83, 0
  %89 = vmatprep.subr.mxu0 0.0
  %90 = vmatpush1.xpose.msra.mxu0 0.0
  %91 = vmatprep.subr.mxu0 0.0
  %92 = vmatpush1.xpose.msra.mxu0 0.0
  %93 = vmatprep.subr.mxu0 0.0
  %94 = vmatpush1.xpose.msra.mxu0 0.0
  %95 = vmatprep.subr.mxu0 0.0
  %96 = vmatpush1.xpose.msra.mxu0 0.0
  %97 = vmatprep.subr.mxu0 0.0
  %98 = vmatpush1.xpose.msra.mxu0 0.0
  %99 = vmatprep.subr.mxu0 0.0
  %100 = vmatpush1.xpose.msra.mxu0 0.0
  %101 = vmatprep.subr.mxu0 0.0
  %102 = vmatpush1.xpose.msra.mxu0 0.0
  %103 = vmatprep.subr.mxu0 0.0
  %104 = vmatpush1.xpose.msra.mxu0 0.0
  %105 = vmatprep.subr.mxu0 0.0
  %106 = vmatpush1.xpose.msra.mxu0 0.0
  %107 = vmatprep.subr.mxu0 0.0
  %108 = vmatpush1.xpose.msra.mxu0 0.0
  %109 = vmatprep.subr.mxu0 0.0
  %110 = vmatpush1.xpose.msra.mxu0 0.0
  %111 = vmatprep.subr.mxu0 0.0
  %112 = vmatpush1.xpose.msra.mxu0 0.0
  %113 = vmatprep.subr.mxu0 0.0
  %114 = vmatpush1.xpose.msra.mxu0 0.0
  %115 = vmatprep.subr.mxu0 0.0
  %116 = vmatpush1.xpose.msra.mxu0 0.0
  %117 = vmatprep.subr.mxu0 0.0
  %118 = vmatpush1.xpose.msra.mxu0 0.0
  %119 = vmatprep.subr.mxu0 0.0
  %120 = vmatpush1.xpose.msra.mxu0 %v87
  %121 = vmatprep.subr.mxu0 0.0
  %122 = vmatpush2.xpose.msra.mxu0 0.0
  %123 = vmatprep.subr.mxu0 0.0
  %124 = vmatpush2.xpose.msra.mxu0 0.0
  %125 = vmatprep.subr.mxu0 0.0
  %126 = vmatpush2.xpose.msra.mxu0 0.0
  %127 = vmatprep.subr.mxu0 0.0
  %128 = vmatpush2.xpose.msra.mxu0 0.0
  %129 = vmatprep.subr.mxu0 0.0
  %130 = vmatpush2.xpose.msra.mxu0 0.0
  %131 = vmatprep.subr.mxu0 0.0
  %132 = vmatpush2.xpose.msra.mxu0 0.0
  %133 = vmatprep.subr.mxu0 0.0
  %134 = vmatpush2.xpose.msra.mxu0 0.0
  %135 = vmatprep.subr.mxu0 0.0
  %136 = vmatpush2.xpose.msra.mxu0 0.0
  %137 = vmatprep.subr.mxu0 0.0
  %138 = vmatpush2.xpose.msra.mxu0 0.0
  %139 = vmatprep.subr.mxu0 0.0
  %140 = vmatpush2.xpose.msra.mxu0 0.0
  %141 = vmatprep.subr.mxu0 0.0
  %142 = vmatpush2.xpose.msra.mxu0 0.0
  %143 = vmatprep.subr.mxu0 0.0
  %144 = vmatpush2.xpose.msra.mxu0 0.0
  %145 = vmatprep.subr.mxu0 0.0
  %146 = vmatpush2.xpose.msra.mxu0 0.0
  %147 = vmatprep.subr.mxu0 0.0
  %148 = vmatpush2.xpose.msra.mxu0 0.0
  %149 = vmatprep.subr.mxu0 0.0
  %150 = vmatpush2.xpose.msra.mxu0 0.0
  %151 = vmatprep.subr.mxu0 0.0
  %152 = vmatpush2.xpose.msra.mxu0 0.0
  %153 = vmatprep.mubr.f32.mxu0 0.0
  %154 = vmatmul.mubr.f32.gmra.mxu0 %v85
  %v155 = vpop.f32.mrf.mxu0
  %v156 = vadd.f32 0.0, %v155
  %v157 = vpop.f32.mrf.mxu0
  %158 = vdwg.mxu0
  %v159 = vmul.f32 %v25, %v25
  %v160 = vmul.f32 %v26, %v26
  %v161 = vmul.f32 %v27, %v27
  %v162 = vmul.f32 %v28, %v28
  %v163 = vmul.f32 %v29, %v29
  %v164 = vmul.f32 %v30, %v30
  %v165 = vmul.f32 %v31, %v31
  %v166 = vmul.f32 %v32, %v32
  %v175 = vrot.slane %v160, 7
  %v176 = vsel %vm45, %v175, %v159
  %v177 = vrot.slane %v161, 6
  %v178 = vsel %vm48, %v177, %v176
  %v179 = vrot.slane %v162, 5
  %v180 = vsel %vm51, %v179, %v178
  %v181 = vrot.slane %v163, 4
  %v182 = vsel %vm54, %v181, %v180
  %v183 = vrot.slane %v164, 3
  %v184 = vsel %vm57, %v183, %v182
  %v185 = vrot.slane %v165, 2
  %v186 = vsel %vm60, %v185, %v184
  %v187 = vrot.slane %v166, 1
  %vm190 = vcmask 261121
  %v191 = vsel %vm190, %v186, 0.0
  %192 = vadd.xlane.f32.xlu0 %v191
  %v193 = vpop.xlane.xlu0 %192
  %vm194 = vcmask 253952
  %v195 = vsel %vm194, %v187, 0.0
  %196 = vadd.xlane.f32.xlu0 %v195
  %v197 = vpop.xlane.xlu0 %196
  %v198 = vmul.f32 %v15, %v15
  %v199 = vmul.f32 %v16, %v16
  %v200 = vmul.f32 %v17, %v17
  %v201 = vmul.f32 %v18, %v18
  %v202 = vmul.f32 %v19, %v19
  %v203 = vmul.f32 %v20, %v20
  %v204 = vmul.f32 %v21, %v21
  %v205 = vmul.f32 %v22, %v22
  %v214 = vrot.slane %v198, 1
  %v215 = vsel %vm42, %v199, %v214
  %v216 = vrot.slane %v200, 7
  %v217 = vsel %vm45, %v216, %v215
  %v218 = vrot.slane %v201, 6
  %v219 = vsel %vm48, %v218, %v217
  %v220 = vrot.slane %v202, 5
  %v221 = vsel %vm51, %v220, %v219
  %v222 = vrot.slane %v203, 4
  %v223 = vsel %vm54, %v222, %v221
  %v224 = vrot.slane %v204, 3
  %v225 = vsel %vm57, %v224, %v223
  %v226 = vrot.slane %v205, 2
  %v227 = vsel %vm60, %v226, %v225
  %v229 = vsel %vm84, 1.0, 0
  %v231 = vsel %vm84, %v227, 0
  %233 = vmatprep.subr.mxu0 0.0
  %234 = vmatpush1.xpose.msra.mxu0 0.0
  %235 = vmatprep.subr.mxu0 0.0
  %236 = vmatpush1.xpose.msra.mxu0 0.0
  %237 = vmatprep.subr.mxu0 0.0
  %238 = vmatpush1.xpose.msra.mxu0 0.0
  %239 = vmatprep.subr.mxu0 0.0
  %240 = vmatpush1.xpose.msra.mxu0 0.0
  %241 = vmatprep.subr.mxu0 0.0
  %242 = vmatpush1.xpose.msra.mxu0 0.0
  %243 = vmatprep.subr.mxu0 0.0
  %244 = vmatpush1.xpose.msra.mxu0 0.0
  %245 = vmatprep.subr.mxu0 0.0
  %246 = vmatpush1.xpose.msra.mxu0 0.0
  %247 = vmatprep.subr.mxu0 0.0
  %248 = vmatpush1.xpose.msra.mxu0 0.0
  %249 = vmatprep.subr.mxu0 0.0
  %250 = vmatpush1.xpose.msra.mxu0 0.0
  %251 = vmatprep.subr.mxu0 0.0
  %252 = vmatpush1.xpose.msra.mxu0 0.0
  %253 = vmatprep.subr.mxu0 0.0
  %254 = vmatpush1.xpose.msra.mxu0 0.0
  %255 = vmatprep.subr.mxu0 0.0
  %256 = vmatpush1.xpose.msra.mxu0 0.0
  %257 = vmatprep.subr.mxu0 0.0
  %258 = vmatpush1.xpose.msra.mxu0 0.0
  %259 = vmatprep.subr.mxu0 0.0
  %260 = vmatpush1.xpose.msra.mxu0 0.0
  %261 = vmatprep.subr.mxu0 0.0
  %262 = vmatpush1.xpose.msra.mxu0 0.0
  %263 = vmatprep.subr.mxu0 0.0
  %264 = vmatpush1.xpose.msra.mxu0 %v231
  %265 = vmatprep.subr.mxu0 0.0
  %266 = vmatpush2.xpose.msra.mxu0 0.0
  %267 = vmatprep.subr.mxu0 0.0
  %268 = vmatpush2.xpose.msra.mxu0 0.0
  %269 = vmatprep.subr.mxu0 0.0
  %270 = vmatpush2.xpose.msra.mxu0 0.0
  %271 = vmatprep.subr.mxu0 0.0
  %272 = vmatpush2.xpose.msra.mxu0 0.0
  %273 = vmatprep.subr.mxu0 0.0
  %274 = vmatpush2.xpose.msra.mxu0 0.0
  %275 = vmatprep.subr.mxu0 0.0
  %276 = vmatpush2.xpose.msra.mxu0 0.0
  %277 = vmatprep.subr.mxu0 0.0
  %278 = vmatpush2.xpose.msra.mxu0 0.0
  %279 = vmatprep.subr.mxu0 0.0
  %280 = vmatpush2.xpose.msra.mxu0 0.0
  %281 = vmatprep.subr.mxu0 0.0
  %282 = vmatpush2.xpose.msra.mxu0 0.0
  %283 = vmatprep.subr.mxu0 0.0
  %284 = vmatpush2.xpose.msra.mxu0 0.0
  %285 = vmatprep.subr.mxu0 0.0
  %286 = vmatpush2.xpose.msra.mxu0 0.0
  %287 = vmatprep.subr.mxu0 0.0
  %288 = vmatpush2.xpose.msra.mxu0 0.0
  %289 = vmatprep.subr.mxu0 0.0
  %290 = vmatpush2.xpose.msra.mxu0 0.0
  %291 = vmatprep.subr.mxu0 0.0
  %292 = vmatpush2.xpose.msra.mxu0 0.0
  %293 = vmatprep.subr.mxu0 0.0
  %294 = vmatpush2.xpose.msra.mxu0 0.0
  %295 = vmatprep.subr.mxu0 0.0
  %296 = vmatpush2.xpose.msra.mxu0 0.0
  %297 = vmatprep.mubr.f32.mxu0 0.0
  %298 = vmatmul.mubr.f32.gmra.mxu0 %v229
  %v299 = vpop.f32.mrf.mxu0
  %v300 = vadd.f32 0.0, %v299
  %v301 = vpop.f32.mrf.mxu0
  %302 = vdwg.mxu0
  %v303 = vmul.f32 %v156, 2.0
  %v305 = vrot.slane %v303, 7
  %v307 = vsub.f32 %v193, %v305
  %v308 = vsub.f32 %v197, %v305
  %v309 = vlaneseq
  %v310 = vshrl.u32 %v309, 7
  %v311 = vsub.s32 0, %v310
  %v312 = vrot.slane %v300, %v311
  %v313 = vadd.f32 %v307, %v312
  %v314 = vadd.f32 %v308, %v312
  %v315 = vmax.f32 %v313, 0.0
  %v316 = vmax.f32 %v314, 0.0
  %v317 = vrsqrt.pop %v315
  %v318 = vmul.f32 %v315, %v317
  %vm319 = vcmp.eq.f32.partialorder %v315, inf
  %v320 = vsel %vm319, %v315, %v318
  %vm321 = vcmp.eq.f32.partialorder %v315, 0.0
  %v322 = vand.u32 %v315, 2147483648
  %v323 = vsel %vm321, %v322, %v320
  %v324 = vrsqrt.pop %v316
  %v325 = vmul.f32 %v316, %v324
  %vm326 = vcmp.eq.f32.partialorder %v316, inf
  %v327 = vsel %vm326, %v316, %v325
  %vm328 = vcmp.eq.f32.partialorder %v316, 0.0
  %v329 = vand.u32 %v316, 2147483648
  %v330 = vsel %vm328, %v329, %v327
  %v331 = vadd.f32 %v323, 0.0
  %v332 = vadd.f32 %v330, 0.0
  %v333 = vrot.slane %v25, 2
  %v334 = vrot.slane %v26, 1
  %v335 = vsel %vm42, %v334, %v333
  %v336 = vsel %vm45, %v27, %v335
  %v337 = vrot.slane %v28, 7
  %v338 = vsel %vm48, %v337, %v336
  %v339 = vrot.slane %v29, 6
  %v340 = vsel %vm51, %v339, %v338
  %v341 = vrot.slane %v30, 5
  %v342 = vsel %vm54, %v341, %v340
  %v343 = vrot.slane %v31, 4
  %v344 = vsel %vm57, %v343, %v342
  %v345 = vrot.slane %v32, 3
  %v346 = vsel %vm60, %v345, %v344
  %v347 = vrot.slane %v15, 2
  %v348 = vrot.slane %v16, 1
  %v349 = vsel %vm42, %v348, %v347
  %v350 = vsel %vm45, %v17, %v349
  %v351 = vrot.slane %v18, 7
  %v352 = vsel %vm48, %v351, %v350
  %v353 = vrot.slane %v19, 6
  %v354 = vsel %vm51, %v353, %v352
  %v355 = vrot.slane %v20, 5
  %v356 = vsel %vm54, %v355, %v354
  %v357 = vrot.slane %v21, 4
  %v358 = vsel %vm57, %v357, %v356
  %v359 = vrot.slane %v22, 3
  %v360 = vsel %vm60, %v359, %v358
  %v361 = vsel %vm84, %v346, 0
  %v363 = vsel %vm84, %v360, 0
  %365 = vmatprep.subr.mxu0 0.0
  %366 = vmatpush1.xpose.msra.mxu0 0.0
  %367 = vmatprep.subr.mxu0 0.0
  %368 = vmatpush1.xpose.msra.mxu0 0.0
  %369 = vmatprep.subr.mxu0 0.0
  %370 = vmatpush1.xpose.msra.mxu0 0.0
  %371 = vmatprep.subr.mxu0 0.0
  %372 = vmatpush1.xpose.msra.mxu0 0.0
  %373 = vmatprep.subr.mxu0 0.0
  %374 = vmatpush1.xpose.msra.mxu0 0.0
  %375 = vmatprep.subr.mxu0 0.0
  %376 = vmatpush1.xpose.msra.mxu0 0.0
  %377 = vmatprep.subr.mxu0 0.0
  %378 = vmatpush1.xpose.msra.mxu0 0.0
  %379 = vmatprep.subr.mxu0 0.0
  %380 = vmatpush1.xpose.msra.mxu0 0.0
  %381 = vmatprep.subr.mxu0 0.0
  %382 = vmatpush1.xpose.msra.mxu0 0.0
  %383 = vmatprep.subr.mxu0 0.0
  %384 = vmatpush1.xpose.msra.mxu0 0.0
  %385 = vmatprep.subr.mxu0 0.0
  %386 = vmatpush1.xpose.msra.mxu0 0.0
  %387 = vmatprep.subr.mxu0 0.0
  %388 = vmatpush1.xpose.msra.mxu0 0.0
  %389 = vmatprep.subr.mxu0 0.0
  %390 = vmatpush1.xpose.msra.mxu0 0.0
  %391 = vmatprep.subr.mxu0 0.0
  %392 = vmatpush1.xpose.msra.mxu0 0.0
  %393 = vmatprep.subr.mxu0 0.0
  %394 = vmatpush1.xpose.msra.mxu0 0.0
  %395 = vmatprep.subr.mxu0 0.0
  %396 = vmatpush1.xpose.msra.mxu0 %v363
  %397 = vmatprep.subr.mxu0 0.0
  %398 = vmatpush2.xpose.msra.mxu0 0.0
  %399 = vmatprep.subr.mxu0 0.0
  %400 = vmatpush2.xpose.msra.mxu0 0.0
  %401 = vmatprep.subr.mxu0 0.0
  %402 = vmatpush2.xpose.msra.mxu0 0.0
  %403 = vmatprep.subr.mxu0 0.0
  %404 = vmatpush2.xpose.msra.mxu0 0.0
  %405 = vmatprep.subr.mxu0 0.0
  %406 = vmatpush2.xpose.msra.mxu0 0.0
  %407 = vmatprep.subr.mxu0 0.0
  %408 = vmatpush2.xpose.msra.mxu0 0.0
  %409 = vmatprep.subr.mxu0 0.0
  %410 = vmatpush2.xpose.msra.mxu0 0.0
  %411 = vmatprep.subr.mxu0 0.0
  %412 = vmatpush2.xpose.msra.mxu0 0.0
  %413 = vmatprep.subr.mxu0 0.0
  %414 = vmatpush2.xpose.msra.mxu0 0.0
  %415 = vmatprep.subr.mxu0 0.0
  %416 = vmatpush2.xpose.msra.mxu0 0.0
  %417 = vmatprep.subr.mxu0 0.0
  %418 = vmatpush2.xpose.msra.mxu0 0.0
  %419 = vmatprep.subr.mxu0 0.0
  %420 = vmatpush2.xpose.msra.mxu0 0.0
  %421 = vmatprep.subr.mxu0 0.0
  %422 = vmatpush2.xpose.msra.mxu0 0.0
  %423 = vmatprep.subr.mxu0 0.0
  %424 = vmatpush2.xpose.msra.mxu0 0.0
  %425 = vmatprep.subr.mxu0 0.0
  %426 = vmatpush2.xpose.msra.mxu0 0.0
  %427 = vmatprep.subr.mxu0 0.0
  %428 = vmatpush2.xpose.msra.mxu0 0.0
  %429 = vmatprep.mubr.f32.mxu0 0.0
  %430 = vmatmul.mubr.f32.gmra.mxu0 %v361
  %v431 = vpop.f32.mrf.mxu0
  %v432 = vadd.f32 0.0, %v431
  %v433 = vpop.f32.mrf.mxu0
  %434 = vdwg.mxu0
  %v435 = vsel %vm48, %v175, %v159
  %v436 = vsel %vm51, %v177, %v435
  %v437 = vsel %vm54, %v179, %v436
  %v438 = vsel %vm57, %v181, %v437
  %v439 = vsel %vm60, %v183, %v438
  %v440 = vsel %vm42, %v187, %v185
  %vm443 = vcmask 261122
  %v444 = vsel %vm443, %v439, 0.0
  %445 = vadd.xlane.f32.xlu0 %v444
  %v446 = vpop.xlane.xlu0 %445
  %vm447 = vcmask 254976
  %v448 = vsel %vm447, %v440, 0.0
  %449 = vadd.xlane.f32.xlu0 %v448
  %v450 = vpop.xlane.xlu0 %449
  %v451 = vrot.slane %v198, 2
  %v452 = vrot.slane %v199, 1
  %v453 = vsel %vm42, %v452, %v451
  %v454 = vsel %vm45, %v200, %v453
  %v455 = vrot.slane %v201, 7
  %v456 = vsel %vm48, %v455, %v454
  %v457 = vrot.slane %v202, 6
  %v458 = vsel %vm51, %v457, %v456
  %v459 = vrot.slane %v203, 5
  %v460 = vsel %vm54, %v459, %v458
  %v461 = vrot.slane %v204, 4
  %v462 = vsel %vm57, %v461, %v460
  %v463 = vrot.slane %v205, 3
  %v464 = vsel %vm60, %v463, %v462
  %v465 = vsel %vm84, %v464, 0
  %467 = vmatprep.subr.mxu0 0.0
  %468 = vmatpush1.xpose.msra.mxu0 0.0
  %469 = vmatprep.subr.mxu0 0.0
  %470 = vmatpush1.xpose.msra.mxu0 0.0
  %471 = vmatprep.subr.mxu0 0.0
  %472 = vmatpush1.xpose.msra.mxu0 0.0
  %473 = vmatprep.subr.mxu0 0.0
  %474 = vmatpush1.xpose.msra.mxu0 0.0
  %475 = vmatprep.subr.mxu0 0.0
  %476 = vmatpush1.xpose.msra.mxu0 0.0
  %477 = vmatprep.subr.mxu0 0.0
  %478 = vmatpush1.xpose.msra.mxu0 0.0
  %479 = vmatprep.subr.mxu0 0.0
  %480 = vmatpush1.xpose.msra.mxu0 0.0
  %481 = vmatprep.subr.mxu0 0.0
  %482 = vmatpush1.xpose.msra.mxu0 0.0
  %483 = vmatprep.subr.mxu0 0.0
  %484 = vmatpush1.xpose.msra.mxu0 0.0
  %485 = vmatprep.subr.mxu0 0.0
  %486 = vmatpush1.xpose.msra.mxu0 0.0
  %487 = vmatprep.subr.mxu0 0.0
  %488 = vmatpush1.xpose.msra.mxu0 0.0
  %489 = vmatprep.subr.mxu0 0.0
  %490 = vmatpush1.xpose.msra.mxu0 0.0
  %491 = vmatprep.subr.mxu0 0.0
  %492 = vmatpush1.xpose.msra.mxu0 0.0
  %493 = vmatprep.subr.mxu0 0.0
  %494 = vmatpush1.xpose.msra.mxu0 0.0
  %495 = vmatprep.subr.mxu0 0.0
  %496 = vmatpush1.xpose.msra.mxu0 0.0
  %497 = vmatprep.subr.mxu0 0.0
  %498 = vmatpush1.xpose.msra.mxu0 %v465
  %499 = vmatprep.subr.mxu0 0.0
  %500 = vmatpush2.xpose.msra.mxu0 0.0
  %501 = vmatprep.subr.mxu0 0.0
  %502 = vmatpush2.xpose.msra.mxu0 0.0
  %503 = vmatprep.subr.mxu0 0.0
  %504 = vmatpush2.xpose.msra.mxu0 0.0
  %505 = vmatprep.subr.mxu0 0.0
  %506 = vmatpush2.xpose.msra.mxu0 0.0
  %507 = vmatprep.subr.mxu0 0.0
  %508 = vmatpush2.xpose.msra.mxu0 0.0
  %509 = vmatprep.subr.mxu0 0.0
  %510 = vmatpush2.xpose.msra.mxu0 0.0
  %511 = vmatprep.subr.mxu0 0.0
  %512 = vmatpush2.xpose.msra.mxu0 0.0
  %513 = vmatprep.subr.mxu0 0.0
  %514 = vmatpush2.xpose.msra.mxu0 0.0
  %515 = vmatprep.subr.mxu0 0.0
  %516 = vmatpush2.xpose.msra.mxu0 0.0
  %517 = vmatprep.subr.mxu0 0.0
  %518 = vmatpush2.xpose.msra.mxu0 0.0
  %519 = vmatprep.subr.mxu0 0.0
  %520 = vmatpush2.xpose.msra.mxu0 0.0
  %521 = vmatprep.subr.mxu0 0.0
  %522 = vmatpush2.xpose.msra.mxu0 0.0
  %523 = vmatprep.subr.mxu0 0.0
  %524 = vmatpush2.xpose.msra.mxu0 0.0
  %525 = vmatprep.subr.mxu0 0.0
  %526 = vmatpush2.xpose.msra.mxu0 0.0
  %527 = vmatprep.subr.mxu0 0.0
  %528 = vmatpush2.xpose.msra.mxu0 0.0
  %529 = vmatprep.subr.mxu0 0.0
  %530 = vmatpush2.xpose.msra.mxu0 0.0
  %531 = vmatprep.mubr.f32.mxu0 0.0
  %532 = vmatmul.mubr.f32.gmra.mxu0 %v229
  %v533 = vpop.f32.mrf.mxu0
  %v534 = vadd.f32 0.0, %v533
  %v535 = vpop.f32.mrf.mxu0
  %536 = vdwg.mxu0
  %v537 = vmul.f32 %v432, 2.0
  %v539 = vrot.slane %v537, 6
  %v541 = vsub.f32 %v446, %v539
  %v542 = vsub.f32 %v450, %v539
  %v543 = vlaneseq
  %v544 = vshrl.u32 %v543, 7
  %v545 = vsub.s32 0, %v544
  %v546 = vrot.slane %v534, %v545
  %v547 = vadd.f32 %v541, %v546
  %v548 = vadd.f32 %v542, %v546
  %v549 = vmax.f32 %v547, 0.0
  %v550 = vmax.f32 %v548, 0.0
  %v551 = vrsqrt.pop %v549
  %v552 = vmul.f32 %v549, %v551
  %vm553 = vcmp.eq.f32.partialorder %v549, inf
  %v554 = vsel %vm553, %v549, %v552
  %vm555 = vcmp.eq.f32.partialorder %v549, 0.0
  %v556 = vand.u32 %v549, 2147483648
  %v557 = vsel %vm555, %v556, %v554
  %v558 = vrsqrt.pop %v550
  %v559 = vmul.f32 %v550, %v558
  %vm560 = vcmp.eq.f32.partialorder %v550, inf
  %v561 = vsel %vm560, %v550, %v559
  %vm562 = vcmp.eq.f32.partialorder %v550, 0.0
  %v563 = vand.u32 %v550, 2147483648
  %v564 = vsel %vm562, %v563, %v561
  %vm567 = vcmask 1046528
  %v568 = vrot.slane %v557, 1
  %v569 = vrot.slane %v564, 1
  %v570 = vsel %vm567, %v568, %v569
  %v573 = vadd.f32 %v331, %v570
  %v574 = vadd.f32 %v332, %v569
  %v575 = vrot.slane %v25, 3
  %v576 = vrot.slane %v26, 2
  %v577 = vsel %vm42, %v576, %v575
  %v578 = vrot.slane %v27, 1
  %v579 = vsel %vm45, %v578, %v577
  %v580 = vsel %vm48, %v28, %v579
  %v581 = vrot.slane %v29, 7
  %v582 = vsel %vm51, %v581, %v580
  %v583 = vrot.slane %v30, 6
  %v584 = vsel %vm54, %v583, %v582
  %v585 = vrot.slane %v31, 5
  %v586 = vsel %vm57, %v585, %v584
  %v587 = vrot.slane %v32, 4
  %v588 = vsel %vm60, %v587, %v586
  %v589 = vrot.slane %v15, 3
  %v590 = vrot.slane %v16, 2
  %v591 = vsel %vm42, %v590, %v589
  %v592 = vrot.slane %v17, 1
  %v593 = vsel %vm45, %v592, %v591
  %v594 = vsel %vm48, %v18, %v593
  %v595 = vrot.slane %v19, 7
  %v596 = vsel %vm51, %v595, %v594
  %v597 = vrot.slane %v20, 6
  %v598 = vsel %vm54, %v597, %v596
  %v599 = vrot.slane %v21, 5
  %v600 = vsel %vm57, %v599, %v598
  %v601 = vrot.slane %v22, 4
  %v602 = vsel %vm60, %v601, %v600
  %v603 = vsel %vm84, %v588, 0
  %v605 = vsel %vm84, %v602, 0
  %607 = vmatprep.subr.mxu0 0.0
  %608 = vmatpush1.xpose.msra.mxu0 0.0
  %609 = vmatprep.subr.mxu0 0.0
  %610 = vmatpush1.xpose.msra.mxu0 0.0
  %611 = vmatprep.subr.mxu0 0.0
  %612 = vmatpush1.xpose.msra.mxu0 0.0
  %613 = vmatprep.subr.mxu0 0.0
  %614 = vmatpush1.xpose.msra.mxu0 0.0
  %615 = vmatprep.subr.mxu0 0.0
  %616 = vmatpush1.xpose.msra.mxu0 0.0
  %617 = vmatprep.subr.mxu0 0.0
  %618 = vmatpush1.xpose.msra.mxu0 0.0
  %619 = vmatprep.subr.mxu0 0.0
  %620 = vmatpush1.xpose.msra.mxu0 0.0
  %621 = vmatprep.subr.mxu0 0.0
  %622 = vmatpush1.xpose.msra.mxu0 0.0
  %623 = vmatprep.subr.mxu0 0.0
  %624 = vmatpush1.xpose.msra.mxu0 0.0
  %625 = vmatprep.subr.mxu0 0.0
  %626 = vmatpush1.xpose.msra.mxu0 0.0
  %627 = vmatprep.subr.mxu0 0.0
  %628 = vmatpush1.xpose.msra.mxu0 0.0
  %629 = vmatprep.subr.mxu0 0.0
  %630 = vmatpush1.xpose.msra.mxu0 0.0
  %631 = vmatprep.subr.mxu0 0.0
  %632 = vmatpush1.xpose.msra.mxu0 0.0
  %633 = vmatprep.subr.mxu0 0.0
  %634 = vmatpush1.xpose.msra.mxu0 0.0
  %635 = vmatprep.subr.mxu0 0.0
  %636 = vmatpush1.xpose.msra.mxu0 0.0
  %637 = vmatprep.subr.mxu0 0.0
  %638 = vmatpush1.xpose.msra.mxu0 %v605
  %639 = vmatprep.subr.mxu0 0.0
  %640 = vmatpush2.xpose.msra.mxu0 0.0
  %641 = vmatprep.subr.mxu0 0.0
  %642 = vmatpush2.xpose.msra.mxu0 0.0
  %643 = vmatprep.subr.mxu0 0.0
  %644 = vmatpush2.xpose.msra.mxu0 0.0
  %645 = vmatprep.subr.mxu0 0.0
  %646 = vmatpush2.xpose.msra.mxu0 0.0
  %647 = vmatprep.subr.mxu0 0.0
  %648 = vmatpush2.xpose.msra.mxu0 0.0
  %649 = vmatprep.subr.mxu0 0.0
  %650 = vmatpush2.xpose.msra.mxu0 0.0
  %651 = vmatprep.subr.mxu0 0.0
  %652 = vmatpush2.xpose.msra.mxu0 0.0
  %653 = vmatprep.subr.mxu0 0.0
  %654 = vmatpush2.xpose.msra.mxu0 0.0
  %655 = vmatprep.subr.mxu0 0.0
  %656 = vmatpush2.xpose.msra.mxu0 0.0
  %657 = vmatprep.subr.mxu0 0.0
  %658 = vmatpush2.xpose.msra.mxu0 0.0
  %659 = vmatprep.subr.mxu0 0.0
  %660 = vmatpush2.xpose.msra.mxu0 0.0
  %661 = vmatprep.subr.mxu0 0.0
  %662 = vmatpush2.xpose.msra.mxu0 0.0
  %663 = vmatprep.subr.mxu0 0.0
  %664 = vmatpush2.xpose.msra.mxu0 0.0
  %665 = vmatprep.subr.mxu0 0.0
  %666 = vmatpush2.xpose.msra.mxu0 0.0
  %667 = vmatprep.subr.mxu0 0.0
  %668 = vmatpush2.xpose.msra.mxu0 0.0
  %669 = vmatprep.subr.mxu0 0.0
  %670 = vmatpush2.xpose.msra.mxu0 0.0
  %671 = vmatprep.mubr.f32.mxu0 0.0
  %672 = vmatmul.mubr.f32.gmra.mxu0 %v603
  %v673 = vpop.f32.mrf.mxu0
  %v674 = vadd.f32 0.0, %v673
  %v675 = vpop.f32.mrf.mxu0
  %676 = vdwg.mxu0
  %v677 = vsel %vm51, %v175, %v159
  %v678 = vsel %vm54, %v177, %v677
  %v679 = vsel %vm57, %v179, %v678
  %v680 = vsel %vm60, %v181, %v679
  %v681 = vsel %vm42, %v185, %v183
  %v682 = vsel %vm45, %v187, %v681
  %vm685 = vcmask 261123
  %v686 = vsel %vm685, %v680, 0.0
  %687 = vadd.xlane.f32.xlu0 %v686
  %v688 = vpop.xlane.xlu0 %687
  %vm689 = vcmask 256000
  %v690 = vsel %vm689, %v682, 0.0
  %691 = vadd.xlane.f32.xlu0 %v690
  %v692 = vpop.xlane.xlu0 %691
  %v693 = vrot.slane %v198, 3
  %v694 = vrot.slane %v199, 2
  %v695 = vsel %vm42, %v694, %v693
  %v696 = vrot.slane %v200, 1
  %v697 = vsel %vm45, %v696, %v695
  %v698 = vsel %vm48, %v201, %v697
  %v699 = vrot.slane %v202, 7
  %v700 = vsel %vm51, %v699, %v698
  %v701 = vrot.slane %v203, 6
  %v702 = vsel %vm54, %v701, %v700
  %v703 = vrot.slane %v204, 5
  %v704 = vsel %vm57, %v703, %v702
  %v705 = vrot.slane %v205, 4
  %v706 = vsel %vm60, %v705, %v704
  %v707 = vsel %vm84, %v706, 0
  %709 = vmatprep.subr.mxu0 0.0
  %710 = vmatpush1.xpose.msra.mxu0 0.0
  %711 = vmatprep.subr.mxu0 0.0
  %712 = vmatpush1.xpose.msra.mxu0 0.0
  %713 = vmatprep.subr.mxu0 0.0
  %714 = vmatpush1.xpose.msra.mxu0 0.0
  %715 = vmatprep.subr.mxu0 0.0
  %716 = vmatpush1.xpose.msra.mxu0 0.0
  %717 = vmatprep.subr.mxu0 0.0
  %718 = vmatpush1.xpose.msra.mxu0 0.0
  %719 = vmatprep.subr.mxu0 0.0
  %720 = vmatpush1.xpose.msra.mxu0 0.0
  %721 = vmatprep.subr.mxu0 0.0
  %722 = vmatpush1.xpose.msra.mxu0 0.0
  %723 = vmatprep.subr.mxu0 0.0
  %724 = vmatpush1.xpose.msra.mxu0 0.0
  %725 = vmatprep.subr.mxu0 0.0
  %726 = vmatpush1.xpose.msra.mxu0 0.0
  %727 = vmatprep.subr.mxu0 0.0
  %728 = vmatpush1.xpose.msra.mxu0 0.0
  %729 = vmatprep.subr.mxu0 0.0
  %730 = vmatpush1.xpose.msra.mxu0 0.0
  %731 = vmatprep.subr.mxu0 0.0
  %732 = vmatpush1.xpose.msra.mxu0 0.0
  %733 = vmatprep.subr.mxu0 0.0
  %734 = vmatpush1.xpose.msra.mxu0 0.0
  %735 = vmatprep.subr.mxu0 0.0
  %736 = vmatpush1.xpose.msra.mxu0 0.0
  %737 = vmatprep.subr.mxu0 0.0
  %738 = vmatpush1.xpose.msra.mxu0 0.0
  %739 = vmatprep.subr.mxu0 0.0
  %740 = vmatpush1.xpose.msra.mxu0 %v707
  %741 = vmatprep.subr.mxu0 0.0
  %742 = vmatpush2.xpose.msra.mxu0 0.0
  %743 = vmatprep.subr.mxu0 0.0
  %744 = vmatpush2.xpose.msra.mxu0 0.0
  %745 = vmatprep.subr.mxu0 0.0
  %746 = vmatpush2.xpose.msra.mxu0 0.0
  %747 = vmatprep.subr.mxu0 0.0
  %748 = vmatpush2.xpose.msra.mxu0 0.0
  %749 = vmatprep.subr.mxu0 0.0
  %750 = vmatpush2.xpose.msra.mxu0 0.0
  %751 = vmatprep.subr.mxu0 0.0
  %752 = vmatpush2.xpose.msra.mxu0 0.0
  %753 = vmatprep.subr.mxu0 0.0
  %754 = vmatpush2.xpose.msra.mxu0 0.0
  %755 = vmatprep.subr.mxu0 0.0
  %756 = vmatpush2.xpose.msra.mxu0 0.0
  %757 = vmatprep.subr.mxu0 0.0
  %758 = vmatpush2.xpose.msra.mxu0 0.0
  %759 = vmatprep.subr.mxu0 0.0
  %760 = vmatpush2.xpose.msra.mxu0 0.0
  %761 = vmatprep.subr.mxu0 0.0
  %762 = vmatpush2.xpose.msra.mxu0 0.0
  %763 = vmatprep.subr.mxu0 0.0
  %764 = vmatpush2.xpose.msra.mxu0 0.0
  %765 = vmatprep.subr.mxu0 0.0
  %766 = vmatpush2.xpose.msra.mxu0 0.0
  %767 = vmatprep.subr.mxu0 0.0
  %768 = vmatpush2.xpose.msra.mxu0 0.0
  %769 = vmatprep.subr.mxu0 0.0
  %770 = vmatpush2.xpose.msra.mxu0 0.0
  %771 = vmatprep.subr.mxu0 0.0
  %772 = vmatpush2.xpose.msra.mxu0 0.0
  %773 = vmatprep.mubr.f32.mxu0 0.0
  %774 = vmatmul.mubr.f32.gmra.mxu0 %v229
  %v775 = vpop.f32.mrf.mxu0
  %v776 = vadd.f32 0.0, %v775
  %v777 = vpop.f32.mrf.mxu0
  %778 = vdwg.mxu0
  %v779 = vmul.f32 %v674, 2.0
  %v781 = vrot.slane %v779, 5
  %v783 = vsub.f32 %v688, %v781
  %v784 = vsub.f32 %v692, %v781
  %v785 = vlaneseq
  %v786 = vshrl.u32 %v785, 7
  %v787 = vsub.s32 0, %v786
  %v788 = vrot.slane %v776, %v787
  %v789 = vadd.f32 %v783, %v788
  %v790 = vadd.f32 %v784, %v788
  %v791 = vmax.f32 %v789, 0.0
  %v792 = vmax.f32 %v790, 0.0
  %v793 = vrsqrt.pop %v791
  %v794 = vmul.f32 %v791, %v793
  %vm795 = vcmp.eq.f32.partialorder %v791, inf
  %v796 = vsel %vm795, %v791, %v794
  %vm797 = vcmp.eq.f32.partialorder %v791, 0.0
  %v798 = vand.u32 %v791, 2147483648
  %v799 = vsel %vm797, %v798, %v796
  %v800 = vrsqrt.pop %v792
  %v801 = vmul.f32 %v792, %v800
  %vm802 = vcmp.eq.f32.partialorder %v792, inf
  %v803 = vsel %vm802, %v792, %v801
  %vm804 = vcmp.eq.f32.partialorder %v792, 0.0
  %v805 = vand.u32 %v792, 2147483648
  %v806 = vsel %vm804, %v805, %v803
  %vm809 = vcmask 1045504
  %v810 = vrot.slane %v799, 2
  %v811 = vrot.slane %v806, 2
  %v812 = vsel %vm809, %v810, %v811
  %v815 = vadd.f32 %v573, %v812
  %v816 = vadd.f32 %v574, %v811
  %v817 = vrot.slane %v25, 4
  %v818 = vrot.slane %v26, 3
  %v819 = vsel %vm42, %v818, %v817
  %v820 = vrot.slane %v27, 2
  %v821 = vsel %vm45, %v820, %v819
  %v822 = vrot.slane %v28, 1
  %v823 = vsel %vm48, %v822, %v821
  %v824 = vsel %vm51, %v29, %v823
  %v825 = vrot.slane %v30, 7
  %v826 = vsel %vm54, %v825, %v824
  %v827 = vrot.slane %v31, 6
  %v828 = vsel %vm57, %v827, %v826
  %v829 = vrot.slane %v32, 5
  %v830 = vsel %vm60, %v829, %v828
  %v831 = vrot.slane %v15, 4
  %v832 = vrot.slane %v16, 3
  %v833 = vsel %vm42, %v832, %v831
  %v834 = vrot.slane %v17, 2
  %v835 = vsel %vm45, %v834, %v833
  %v836 = vrot.slane %v18, 1
  %v837 = vsel %vm48, %v836, %v835
  %v838 = vsel %vm51, %v19, %v837
  %v839 = vrot.slane %v20, 7
  %v840 = vsel %vm54, %v839, %v838
  %v841 = vrot.slane %v21, 6
  %v842 = vsel %vm57, %v841, %v840
  %v843 = vrot.slane %v22, 5
  %v844 = vsel %vm60, %v843, %v842
  %v845 = vsel %vm84, %v830, 0
  %v847 = vsel %vm84, %v844, 0
  %849 = vmatprep.subr.mxu0 0.0
  %850 = vmatpush1.xpose.msra.mxu0 0.0
  %851 = vmatprep.subr.mxu0 0.0
  %852 = vmatpush1.xpose.msra.mxu0 0.0
  %853 = vmatprep.subr.mxu0 0.0
  %854 = vmatpush1.xpose.msra.mxu0 0.0
  %855 = vmatprep.subr.mxu0 0.0
  %856 = vmatpush1.xpose.msra.mxu0 0.0
  %857 = vmatprep.subr.mxu0 0.0
  %858 = vmatpush1.xpose.msra.mxu0 0.0
  %859 = vmatprep.subr.mxu0 0.0
  %860 = vmatpush1.xpose.msra.mxu0 0.0
  %861 = vmatprep.subr.mxu0 0.0
  %862 = vmatpush1.xpose.msra.mxu0 0.0
  %863 = vmatprep.subr.mxu0 0.0
  %864 = vmatpush1.xpose.msra.mxu0 0.0
  %865 = vmatprep.subr.mxu0 0.0
  %866 = vmatpush1.xpose.msra.mxu0 0.0
  %867 = vmatprep.subr.mxu0 0.0
  %868 = vmatpush1.xpose.msra.mxu0 0.0
  %869 = vmatprep.subr.mxu0 0.0
  %870 = vmatpush1.xpose.msra.mxu0 0.0
  %871 = vmatprep.subr.mxu0 0.0
  %872 = vmatpush1.xpose.msra.mxu0 0.0
  %873 = vmatprep.subr.mxu0 0.0
  %874 = vmatpush1.xpose.msra.mxu0 0.0
  %875 = vmatprep.subr.mxu0 0.0
  %876 = vmatpush1.xpose.msra.mxu0 0.0
  %877 = vmatprep.subr.mxu0 0.0
  %878 = vmatpush1.xpose.msra.mxu0 0.0
  %879 = vmatprep.subr.mxu0 0.0
  %880 = vmatpush1.xpose.msra.mxu0 %v847
  %881 = vmatprep.subr.mxu0 0.0
  %882 = vmatpush2.xpose.msra.mxu0 0.0
  %883 = vmatprep.subr.mxu0 0.0
  %884 = vmatpush2.xpose.msra.mxu0 0.0
  %885 = vmatprep.subr.mxu0 0.0
  %886 = vmatpush2.xpose.msra.mxu0 0.0
  %887 = vmatprep.subr.mxu0 0.0
  %888 = vmatpush2.xpose.msra.mxu0 0.0
  %889 = vmatprep.subr.mxu0 0.0
  %890 = vmatpush2.xpose.msra.mxu0 0.0
  %891 = vmatprep.subr.mxu0 0.0
  %892 = vmatpush2.xpose.msra.mxu0 0.0
  %893 = vmatprep.subr.mxu0 0.0
  %894 = vmatpush2.xpose.msra.mxu0 0.0
  %895 = vmatprep.subr.mxu0 0.0
  %896 = vmatpush2.xpose.msra.mxu0 0.0
  %897 = vmatprep.subr.mxu0 0.0
  %898 = vmatpush2.xpose.msra.mxu0 0.0
  %899 = vmatprep.subr.mxu0 0.0
  %900 = vmatpush2.xpose.msra.mxu0 0.0
  %901 = vmatprep.subr.mxu0 0.0
  %902 = vmatpush2.xpose.msra.mxu0 0.0
  %903 = vmatprep.subr.mxu0 0.0
  %904 = vmatpush2.xpose.msra.mxu0 0.0
  %905 = vmatprep.subr.mxu0 0.0
  %906 = vmatpush2.xpose.msra.mxu0 0.0
  %907 = vmatprep.subr.mxu0 0.0
  %908 = vmatpush2.xpose.msra.mxu0 0.0
  %909 = vmatprep.subr.mxu0 0.0
  %910 = vmatpush2.xpose.msra.mxu0 0.0
  %911 = vmatprep.subr.mxu0 0.0
  %912 = vmatpush2.xpose.msra.mxu0 0.0
  %913 = vmatprep.mubr.f32.mxu0 0.0
  %914 = vmatmul.mubr.f32.gmra.mxu0 %v845
  %v915 = vpop.f32.mrf.mxu0
  %v916 = vadd.f32 0.0, %v915
  %v917 = vpop.f32.mrf.mxu0
  %918 = vdwg.mxu0
  %v919 = vsel %vm54, %v175, %v159
  %v920 = vsel %vm57, %v177, %v919
  %v921 = vsel %vm60, %v179, %v920
  %v922 = vsel %vm42, %v183, %v181
  %v923 = vsel %vm45, %v185, %v922
  %v924 = vsel %vm48, %v187, %v923
  %vm927 = vcmask 261124
  %v928 = vsel %vm927, %v921, 0.0
  %929 = vadd.xlane.f32.xlu0 %v928
  %v930 = vpop.xlane.xlu0 %929
  %vm931 = vcmask 257024
  %v932 = vsel %vm931, %v924, 0.0
  %933 = vadd.xlane.f32.xlu0 %v932
  %v934 = vpop.xlane.xlu0 %933
  %v935 = vrot.slane %v198, 4
  %v936 = vrot.slane %v199, 3
  %v937 = vsel %vm42, %v936, %v935
  %v938 = vrot.slane %v200, 2
  %v939 = vsel %vm45, %v938, %v937
  %v940 = vrot.slane %v201, 1
  %v941 = vsel %vm48, %v940, %v939
  %v942 = vsel %vm51, %v202, %v941
  %v943 = vrot.slane %v203, 7
  %v944 = vsel %vm54, %v943, %v942
  %v945 = vrot.slane %v204, 6
  %v946 = vsel %vm57, %v945, %v944
  %v947 = vrot.slane %v205, 5
  %v948 = vsel %vm60, %v947, %v946
  %v949 = vsel %vm84, %v948, 0
  %951 = vmatprep.subr.mxu0 0.0
  %952 = vmatpush1.xpose.msra.mxu0 0.0
  %953 = vmatprep.subr.mxu0 0.0
  %954 = vmatpush1.xpose.msra.mxu0 0.0
  %955 = vmatprep.subr.mxu0 0.0
  %956 = vmatpush1.xpose.msra.mxu0 0.0
  %957 = vmatprep.subr.mxu0 0.0
  %958 = vmatpush1.xpose.msra.mxu0 0.0
  %959 = vmatprep.subr.mxu0 0.0
  %960 = vmatpush1.xpose.msra.mxu0 0.0
  %961 = vmatprep.subr.mxu0 0.0
  %962 = vmatpush1.xpose.msra.mxu0 0.0
  %963 = vmatprep.subr.mxu0 0.0
  %964 = vmatpush1.xpose.msra.mxu0 0.0
  %965 = vmatprep.subr.mxu0 0.0
  %966 = vmatpush1.xpose.msra.mxu0 0.0
  %967 = vmatprep.subr.mxu0 0.0
  %968 = vmatpush1.xpose.msra.mxu0 0.0
  %969 = vmatprep.subr.mxu0 0.0
  %970 = vmatpush1.xpose.msra.mxu0 0.0
  %971 = vmatprep.subr.mxu0 0.0
  %972 = vmatpush1.xpose.msra.mxu0 0.0
  %973 = vmatprep.subr.mxu0 0.0
  %974 = vmatpush1.xpose.msra.mxu0 0.0
  %975 = vmatprep.subr.mxu0 0.0
  %976 = vmatpush1.xpose.msra.mxu0 0.0
  %977 = vmatprep.subr.mxu0 0.0
  %978 = vmatpush1.xpose.msra.mxu0 0.0
  %979 = vmatprep.subr.mxu0 0.0
  %980 = vmatpush1.xpose.msra.mxu0 0.0
  %981 = vmatprep.subr.mxu0 0.0
  %982 = vmatpush1.xpose.msra.mxu0 %v949
  %983 = vmatprep.subr.mxu0 0.0
  %984 = vmatpush2.xpose.msra.mxu0 0.0
  %985 = vmatprep.subr.mxu0 0.0
  %986 = vmatpush2.xpose.msra.mxu0 0.0
  %987 = vmatprep.subr.mxu0 0.0
  %988 = vmatpush2.xpose.msra.mxu0 0.0
  %989 = vmatprep.subr.mxu0 0.0
  %990 = vmatpush2.xpose.msra.mxu0 0.0
  %991 = vmatprep.subr.mxu0 0.0
  %992 = vmatpush2.xpose.msra.mxu0 0.0
  %993 = vmatprep.subr.mxu0 0.0
  %994 = vmatpush2.xpose.msra.mxu0 0.0
  %995 = vmatprep.subr.mxu0 0.0
  %996 = vmatpush2.xpose.msra.mxu0 0.0
  %997 = vmatprep.subr.mxu0 0.0
  %998 = vmatpush2.xpose.msra.mxu0 0.0
  %999 = vmatprep.subr.mxu0 0.0
  %1000 = vmatpush2.xpose.msra.mxu0 0.0
  %1001 = vmatprep.subr.mxu0 0.0
  %1002 = vmatpush2.xpose.msra.mxu0 0.0
  %1003 = vmatprep.subr.mxu0 0.0
  %1004 = vmatpush2.xpose.msra.mxu0 0.0
  %1005 = vmatprep.subr.mxu0 0.0
  %1006 = vmatpush2.xpose.msra.mxu0 0.0
  %1007 = vmatprep.subr.mxu0 0.0
  %1008 = vmatpush2.xpose.msra.mxu0 0.0
  %1009 = vmatprep.subr.mxu0 0.0
  %1010 = vmatpush2.xpose.msra.mxu0 0.0
  %1011 = vmatprep.subr.mxu0 0.0
  %1012 = vmatpush2.xpose.msra.mxu0 0.0
  %1013 = vmatprep.subr.mxu0 0.0
  %1014 = vmatpush2.xpose.msra.mxu0 0.0
  %1015 = vmatprep.mubr.f32.mxu0 0.0
  %1016 = vmatmul.mubr.f32.gmra.mxu0 %v229
  %v1017 = vpop.f32.mrf.mxu0
  %v1018 = vadd.f32 0.0, %v1017
  %v1019 = vpop.f32.mrf.mxu0
  %1020 = vdwg.mxu0
  %v1021 = vmul.f32 %v916, 2.0
  %v1023 = vrot.slane %v1021, 4
  %v1025 = vsub.f32 %v930, %v1023
  %v1026 = vsub.f32 %v934, %v1023
  %v1027 = vlaneseq
  %v1028 = vshrl.u32 %v1027, 7
  %v1029 = vsub.s32 0, %v1028
  %v1030 = vrot.slane %v1018, %v1029
  %v1031 = vadd.f32 %v1025, %v1030
  %v1032 = vadd.f32 %v1026, %v1030
  %v1033 = vmax.f32 %v1031, 0.0
  %v1034 = vmax.f32 %v1032, 0.0
  %v1035 = vrsqrt.pop %v1033
  %v1036 = vmul.f32 %v1033, %v1035
  %vm1037 = vcmp.eq.f32.partialorder %v1033, inf
  %v1038 = vsel %vm1037, %v1033, %v1036
  %vm1039 = vcmp.eq.f32.partialorder %v1033, 0.0
  %v1040 = vand.u32 %v1033, 2147483648
  %v1041 = vsel %vm1039, %v1040, %v1038
  %v1042 = vrsqrt.pop %v1034
  %v1043 = vmul.f32 %v1034, %v1042
  %vm1044 = vcmp.eq.f32.partialorder %v1034, inf
  %v1045 = vsel %vm1044, %v1034, %v1043
  %vm1046 = vcmp.eq.f32.partialorder %v1034, 0.0
  %v1047 = vand.u32 %v1034, 2147483648
  %v1048 = vsel %vm1046, %v1047, %v1045
  %vm1051 = vcmask 1044480
  %v1052 = vrot.slane %v1041, 3
  %v1053 = vrot.slane %v1048, 3
  %v1054 = vsel %vm1051, %v1052, %v1053
  %v1057 = vadd.f32 %v815, %v1054
  %v1058 = vadd.f32 %v816, %v1053
  %v1059 = vmul.f32 %v1057, 0.375
  %v1060 = vmul.f32 %v1058, 0.375
  %v1061 = vld [vmem:[%s0] sm:$0x1]
  %v1062 = vld [vmem:[%s1] sm:$0xff]
  %1063 = vset.pattern.permute.xlu0 0
  %1064 = vperm.xlu0 %1063, %v1062
  %v1065 = vpop.permute.xlu0 %1064
  %v1066 = vlaneseq
  %v1067 = vshrl.u32 %v1066, 7
  %v1068 = vsub.s32 0, %v1067
  %v1069 = vrot.slane %v1061, %v1068
  %vm1070 = vcmp.eq.s32.totalorder %v1065, %v1069
  %v1071 = vlaneseq
  %v1072 = vshrl.u32 %v1071, 7
  %v1073 = vstv %s14
  %v1074 = vadd.s32 %v1073, %v1072
  %v1075 = vlaneseq
  %v1076 = vand.u32 %v1075, 127
  %vm1077 = vcmp.ne.s32.totalorder %v1074, %v1076
  %vm1078 = vmand %vm1077, %vm1070
  %v1079 = vsel %vm1078, 1, 0
  %v1080 = vcvt.s32.f32 %v1079
  %vm1081 = vmxor %vm1070, 1
  %v1082 = vsel %vm1081, 1, 0
  %v1083 = vcvt.s32.f32 %v1082
  %v1085 = vrot.slane %v1080, 7
  %v1087 = vmul.f32 %v1059, %v1085
  %v1088 = vmul.f32 %v1060, %v1085
  %v1089 = vsub.f32 1.0, %v1080
  %v1091 = vrot.slane %v1089, 7
  %v1093 = vsub.f32 %v1087, %v1091
  %v1094 = vsub.f32 %v1088, %v1091
  %vm1095 = vcmask 64513
  %v1096 = vsel %vm1095, %v1093, -inf
  %1097 = vmax.xlane.f32.xlu0 %v1096
  %v1098 = vpop.xlane.xlu0 %1097
  %vm1099 = vcmask 57344
  %v1100 = vsel %vm1099, %v1094, -inf
  %1101 = vmax.xlane.f32.xlu0 %v1100
  %v1102 = vpop.xlane.xlu0 %1101
  %v1104 = vrot.slane %v1083, 7
  %v1106 = vmul.f32 %v1059, %v1104
  %v1107 = vmul.f32 %v1060, %v1104
  %v1108 = vsub.f32 1.0, %v1083
  %v1109 = vmul.f32 %v1108, 3.4028235e+38
  %v1111 = vrot.slane %v1109, 7
  %v1113 = vadd.f32 %v1106, %v1111
  %v1114 = vadd.f32 %v1107, %v1111
  %v1115 = vsel %vm1095, %v1113, inf
  %1116 = vmin.xlane.f32.xlu0 %v1115
  %v1117 = vpop.xlane.xlu0 %1116
  %v1118 = vsel %vm1099, %v1114, inf
  %1119 = vmin.xlane.f32.xlu0 %v1118
  %v1120 = vpop.xlane.xlu0 %1119
  %vm1121 = vcmp.ne.f32.partialorder %v1098, -1.0
  %vm1122 = vcmp.ne.f32.partialorder %v1102, -1.0
  %vm1123 = vcmp.ne.f32.partialorder %v1117, 3.4028235e+38
  %vm1124 = vcmp.ne.f32.partialorder %v1120, 3.4028235e+38
  %vm1125 = vmand %vm1121, %vm1123
  %vm1126 = vmand %vm1122, %vm1124
  %v1127 = vsel %vm1125, 1, 0
  %v1128 = vsel %vm1126, 1, 0
  %v1129 = vcvt.s32.f32 %v1127
  %v1130 = vcvt.s32.f32 %v1128
  %v1131 = vsub.f32 %v1098, %v1117
  %v1132 = vsub.f32 %v1102, %v1120
  %v1133 = vadd.f32 %v1131, 0.3
  %v1134 = vadd.f32 %v1132, 0.3
  %v1135 = vmax.f32 %v1133, 0.0
  %v1136 = vmax.f32 %v1134, 0.0
  %v1137 = vmul.f32 %v1135, %v1129
  %v1138 = vmul.f32 %v1136, %v1130
  %v1141 = vrot.slane %v1137, 1
  %v1142 = vrot.slane %v1138, 1
  %v1143 = vsel %vm567, %v1141, %v1142
  %v1145 = vrot.slane %v1143, 4
  %v1146 = vadd.f32 %v1143, %v1145
  %v1147 = vrot.slane %v1146, 2
  %v1148 = vadd.f32 %v1146, %v1147
  %v1149 = vrot.slane %v1148, 1
  %v1150 = vadd.f32 %v1148, %v1149
  %vm1151 = vcmp.eq.f32.partialorder %v1135, 0.0
  %vm1152 = vcmp.eq.f32.partialorder %v1136, 0.0
  %v1153 = vsel %vm1151, 1, 0
  %v1154 = vsel %vm1152, 1, 0
  %v1155 = vcvt.s32.f32 %v1153
  %v1156 = vcvt.s32.f32 %v1154
  %v1157 = vmul.f32 %v1155, %v1129
  %v1158 = vmul.f32 %v1156, %v1130
  %v1161 = vrot.slane %v1157, 1
  %v1162 = vrot.slane %v1158, 1
  %v1163 = vsel %vm567, %v1161, %v1162
  %v1165 = vrot.slane %v1163, 4
  %v1166 = vadd.f32 %v1163, %v1165
  %v1167 = vrot.slane %v1166, 2
  %v1168 = vadd.f32 %v1166, %v1167
  %v1169 = vrot.slane %v1168, 1
  %v1170 = vadd.f32 %v1168, %v1169
  %v1173 = vrot.slane %v1129, 1
  %v1174 = vrot.slane %v1130, 1
  %v1175 = vsel %vm567, %v1173, %v1174
  %v1177 = vrot.slane %v1175, 4
  %v1178 = vadd.f32 %v1175, %v1177
  %v1179 = vrot.slane %v1178, 2
  %v1180 = vadd.f32 %v1178, %v1179
  %v1181 = vrot.slane %v1180, 1
  %v1182 = vadd.f32 %v1180, %v1181
  %vm1183 = vcmp.eq.s32.totalorder %v1076, 0
  %vm1184 = vcmp.eq.s32.totalorder %v1076, 1
  %v1185 = vsel %vm1184, %v1170, %v1182
  %v1186 = vsel %vm1183, %v1150, %v1185
  %vm1187 = vcmask 16384
  %1188 = vst.msk [vmem:[%s3] sm:$0x1] %vm1187, %v1186
  // Predicated region
  $region14: #{part_soft_triplet_loss.1} parent=0 // pred_check
    _
  $region15: #{part_soft_triplet_loss.1} parent=0 // pred_check_branch
    %1190 = sbr.rel (0) target = $region17
  $region16: #{part_soft_triplet_loss.1} parent=0 // pred_region
    _
  $region17: #{part_soft_triplet_loss.1} parent=0 // pred_fallthru
    _
  // Predicated region
  $region18: #{part_soft_triplet_loss.1} parent=0 // pred_check
    _
  $region19: #{part_soft_triplet_loss.1} parent=0 // pred_check_branch
    %1192 = sbr.rel (0) target = $region21
  $region20: #{part_soft_triplet_loss.1} parent=0 // pred_region
    _
  $region21: #{part_soft_triplet_loss.1} parent=0 // pred_fallthru
    _

</llo_original>
